<compile_context>
chip_gen: v5e
topology: v5e:2x2
jax: 0.10.0
libtpu: 0.0.40
codegen_flags: <defaults>
</compile_context>

<pallas_src>
import functools

import jax
import jax.numpy as jnp
from jax.experimental import pallas as pl
from jax.experimental.pallas import tpu as pltpu

DIMS = (784, 300, 100, 10)
# Lane-aligned padded feature dims per layer boundary (input K=784 stays unpadded).
PADDED = (784, 384, 128, 128)


def _round_up(n, m):
    return ((n + m - 1) // m) * m


def ternarize_unit(w, eps=1e-5):
    """BitNet-b1.58 ternarization → ({-1, 0, +1} codes, f32 scale)."""
    scale = jnp.mean(jnp.abs(w))
    wq = jnp.clip(jnp.round(w / (scale + eps)), -1.0, 1.0)
    return wq, scale


def prepare_params(params):
    """Hoisted weight prep: ternarize, transpose, pad, cast codes to bf16.

    Returns ((W1, SB1), (W2, SB2), (W3, SB3)) where
      Wk : (d_in_pad, d_out_pad) bf16 in {-1, 0, +1}
      SBk: (2, d_out_pad) f32, row 0 = per-layer scale, row 1 = bias.
    """
    packed = []
    for (w, b), d_in_pad, d_out_pad in zip(params, PADDED[:-1], PADDED[1:]):
        wq, scale = ternarize_unit(w)
        wt = wq.T  # (in, out) so the kernel computes y = x @ W
        wt = jnp.pad(wt, ((0, d_in_pad - wt.shape[0]), (0, d_out_pad - wt.shape[1])))
        sb = jnp.stack([
            jnp.full((d_out_pad,), scale, jnp.float32),
            jnp.pad(b.astype(jnp.float32), (0, d_out_pad - b.shape[0])),
        ])
        packed.append((wt.astype(jnp.bfloat16), sb))
    return tuple(packed)


def _ternnet_kernel(x_ref, w1_ref, sb1_ref, w2_ref, sb2_ref, w3_ref, sb3_ref, o_ref):
    # Three back-to-back bf16 MXU matmuls with f32 accumulation; hidden
    # activations never leave VMEM.  Scale is applied post-dot in f32 (exact
    # ternary levels in bf16, scale precision preserved), then bias is added.
    x = x_ref[...].astype(jnp.bfloat16)
    h = jnp.dot(x, w1_ref[...], preferred_element_type=jnp.float32)
    h = h * sb1_ref[0:1, :] + sb1_ref[1:2, :]
    h = jnp.dot(h.astype(jnp.bfloat16), w2_ref[...], preferred_element_type=jnp.float32)
    h = h * sb2_ref[0:1, :] + sb2_ref[1:2, :]
    h = jnp.dot(h.astype(jnp.bfloat16), w3_ref[...], preferred_element_type=jnp.float32)
    o_ref[...] = h * sb3_ref[0:1, :] + sb3_ref[1:2, :]


@functools.partial(jax.jit, static_argnames=("tb",))
def _ternnet_forward_impl(xf, packed, tb):
    B = xf.shape[0]
    Bp = _round_up(B, tb)
    if Bp != B:
        # Batch-only padding (fused under jit); the 784 lane dim is untouched.
        xf = jnp.pad(xf, ((0, Bp - B), (0, 0)))

    (w1, sb1), (w2, sb2), (w3, sb3) = packed
    d0, d1, d2, d3 = PADDED

    out = pl.pallas_call(
        _ternnet_kernel,
        out_shape=jax.ShapeDtypeStruct((Bp, d3), jnp.float32),
        grid_spec=pltpu.PrefetchScalarGridSpec(
            num_scalar_prefetch=0,
            grid=(Bp // tb,),
            in_specs=[
                # x tile: pipelined along the batch grid axis.
                pl.BlockSpec((tb, d0), lambda i: (i, 0)),
                # Weights / scale-bias rows: grid-invariant (constant index_map
                # → fetched once, reused across all batch tiles).
                pl.BlockSpec((d0, d1), lambda i: (0, 0)),
                pl.BlockSpec((2, d1), lambda i: (0, 0)),
                pl.BlockSpec((d1, d2), lambda i: (0, 0)),
                pl.BlockSpec((2, d2), lambda i: (0, 0)),
                pl.BlockSpec((d2, d3), lambda i: (0, 0)),
                pl.BlockSpec((2, d3), lambda i: (0, 0)),
            ],
            out_specs=pl.BlockSpec((tb, d3), lambda i: (i, 0)),
        ),
        compiler_params=pltpu.CompilerParams(
            # Independent batch tiles → shardable across v7x's two TensorCores;
            # harmless on single-TC v5e/v6e.
            dimension_semantics=("parallel",),
        ),
    )(xf, w1, sb1, w2, sb2, w3, sb3)

    return out[:B, :DIMS[-1]]


def ternnet_forward(x, packed, tb=None):
    """x: (B, 1, 28, 28) or (B, 784) float32. Returns (B, 10) float32."""
    xf = jnp.asarray(x, jnp.float32).reshape(-1, DIMS[0])
    B = xf.shape[0]
    if tb is None:
        # Big enough tiles to feed the MXU / hide DMA; small batches use one tile.
        tb = min(512, _round_up(max(B, 8), 8))
    return _ternnet_forward_impl(xf, packed, tb)


def init_params(key):
    """Deterministic nn.Linear-style init: U(-1/sqrt(fan_in), 1/sqrt(fan_in))."""
    params = []
    for fan_in, fan_out in zip(DIMS[:-1], DIMS[1:]):
        key, kw, kb = jax.random.split(key, 3)
        bound = 1.0 / (fan_in ** 0.5)
        w = jax.random.uniform(kw, (fan_out, fan_in), jnp.float32, -bound, bound)
        b = jax.random.uniform(kb, (fan_out,), jnp.float32, -bound, bound)
        params.append((w, b))
    return params


def reference_forward(x, params):
    """Pure-JAX f32 reference (PyTorch semantics under the ternarization assumption)."""
    h = jnp.asarray(x, jnp.float32).reshape(-1, DIMS[0])
    for w, b in params:
        wq, scale = ternarize_unit(w)
        h = h @ (wq * scale).T + b
    return h


if __name__ == "__main__":
    key = jax.random.PRNGKey(0)
    kx, kp = jax.random.split(key)
    x = jax.random.normal(kx, (2, 1, 28, 28), dtype=jnp.float32)
    params = init_params(kp)

    packed = prepare_params(params)  # hoisted weight prep (once, outside forward)
    out = jax.block_until_ready(ternnet_forward(x, packed))
    assert out.shape == (2, 10), out.shape

    ref = reference_forward(x, params)
    assert jnp.allclose(out, ref, rtol=2e-2, atol=2e-2), (
        "mismatch vs reference", float(jnp.max(jnp.abs(out - ref))))

    print("KERNEL_OK")
</pallas_src>

<mosaic_0001>
module attributes {stable_mosaic.version = 11 : i64} {
  func.func @_ternnet_kernel(%arg0: i32, %arg1: memref<8x784xf32, #tpu.memory_space<vmem>>, %arg2: memref<784x384xbf16, #tpu.memory_space<vmem>>, %arg3: memref<2x384xf32, #tpu.memory_space<vmem>>, %arg4: memref<384x128xbf16, #tpu.memory_space<vmem>>, %arg5: memref<2x128xf32, #tpu.memory_space<vmem>>, %arg6: memref<128x128xbf16, #tpu.memory_space<vmem>>, %arg7: memref<2x128xf32, #tpu.memory_space<vmem>>, %arg8: memref<8x128xf32, #tpu.memory_space<vmem>>) attributes {dimension_semantics = [#tpu.dimension_semantics<parallel>], iteration_bounds = array<i64: 1>, scalar_prefetch = 0 : i64, scratch_operands = 0 : i64, tpu.core_type = #tpu.core_type<tc>, window_params = [{transform_indices = @transform_0, window_bounds = array<i64: 8, 784>}, {pipeline_mode = #tpu.pipeline_mode<synchronous>, transform_indices = @transform_1, window_bounds = array<i64: 784, 384>}, {pipeline_mode = #tpu.pipeline_mode<synchronous>, transform_indices = @transform_2, window_bounds = array<i64: 2, 384>}, {pipeline_mode = #tpu.pipeline_mode<synchronous>, transform_indices = @transform_3, window_bounds = array<i64: 384, 128>}, {pipeline_mode = #tpu.pipeline_mode<synchronous>, transform_indices = @transform_4, window_bounds = array<i64: 2, 128>}, {pipeline_mode = #tpu.pipeline_mode<synchronous>, transform_indices = @transform_5, window_bounds = array<i64: 128, 128>}, {pipeline_mode = #tpu.pipeline_mode<synchronous>, transform_indices = @transform_6, window_bounds = array<i64: 2, 128>}, {transform_indices = @transform_7, window_bounds = array<i64: 8, 128>}]} {
    %c0 = arith.constant 0 : index
    %c0_0 = arith.constant 0 : index
    %0 = vector.load %arg1[%c0, %c0_0] : memref<8x784xf32, #tpu.memory_space<vmem>>, vector<8x784xf32>
    %1 = arith.truncf %0 : vector<8x784xf32> to vector<8x784xbf16>
    %c0_1 = arith.constant 0 : index
    %c0_2 = arith.constant 0 : index
    %2 = vector.load %arg2[%c0_1, %c0_2] : memref<784x384xbf16, #tpu.memory_space<vmem>>, vector<784x384xbf16>
    %cst = arith.constant dense<0.000000e+00> : vector<8x384xf32>
    %3 = tpu.matmul %1, %2, %cst {dimension_numbers = #tpu.dot_dimension_numbers<[1], [0], [0], [1], [0, 0, 1, 1], [], []>} : vector<8x784xbf16>, vector<784x384xbf16>, vector<8x384xf32> -> vector<8x384xf32>
    %c0_3 = arith.constant 0 : index
    %c0_4 = arith.constant 0 : index
    %4 = vector.load %arg3[%c0_3, %c0_4] : memref<2x384xf32, #tpu.memory_space<vmem>>, vector<1x384xf32>
    %5 = vector.broadcast %4 : vector<1x384xf32> to vector<8x384xf32>
    %6 = arith.mulf %3, %5 : vector<8x384xf32>
    %c1 = arith.constant 1 : index
    %c0_5 = arith.constant 0 : index
    %7 = vector.load %arg3[%c1, %c0_5] : memref<2x384xf32, #tpu.memory_space<vmem>>, vector<1x384xf32>
    %8 = vector.broadcast %7 : vector<1x384xf32> to vector<8x384xf32>
    %9 = arith.addf %6, %8 : vector<8x384xf32>
    %10 = arith.truncf %9 : vector<8x384xf32> to vector<8x384xbf16>
    %c0_6 = arith.constant 0 : index
    %c0_7 = arith.constant 0 : index
    %11 = vector.load %arg4[%c0_6, %c0_7] : memref<384x128xbf16, #tpu.memory_space<vmem>>, vector<384x128xbf16>
    %cst_8 = arith.constant dense<0.000000e+00> : vector<8x128xf32>
    %12 = tpu.matmul %10, %11, %cst_8 {dimension_numbers = #tpu.dot_dimension_numbers<[1], [0], [0], [1], [0, 0, 1, 1], [], []>} : vector<8x384xbf16>, vector<384x128xbf16>, vector<8x128xf32> -> vector<8x128xf32>
    %c0_9 = arith.constant 0 : index
    %c0_10 = arith.constant 0 : index
    %13 = vector.load %arg5[%c0_9, %c0_10] : memref<2x128xf32, #tpu.memory_space<vmem>>, vector<1x128xf32>
    %14 = vector.broadcast %13 : vector<1x128xf32> to vector<8x128xf32>
    %15 = arith.mulf %12, %14 : vector<8x128xf32>
    %c1_11 = arith.constant 1 : index
    %c0_12 = arith.constant 0 : index
    %16 = vector.load %arg5[%c1_11, %c0_12] : memref<2x128xf32, #tpu.memory_space<vmem>>, vector<1x128xf32>
    %17 = vector.broadcast %16 : vector<1x128xf32> to vector<8x128xf32>
    %18 = arith.addf %15, %17 : vector<8x128xf32>
    %19 = arith.truncf %18 : vector<8x128xf32> to vector<8x128xbf16>
    %c0_13 = arith.constant 0 : index
    %c0_14 = arith.constant 0 : index
    %20 = vector.load %arg6[%c0_13, %c0_14] : memref<128x128xbf16, #tpu.memory_space<vmem>>, vector<128x128xbf16>
    %cst_15 = arith.constant dense<0.000000e+00> : vector<8x128xf32>
    %21 = tpu.matmul %19, %20, %cst_15 {dimension_numbers = #tpu.dot_dimension_numbers<[1], [0], [0], [1], [0, 0, 1, 1], [], []>} : vector<8x128xbf16>, vector<128x128xbf16>, vector<8x128xf32> -> vector<8x128xf32>
    %c0_16 = arith.constant 0 : index
    %c0_17 = arith.constant 0 : index
    %22 = vector.load %arg7[%c0_16, %c0_17] : memref<2x128xf32, #tpu.memory_space<vmem>>, vector<1x128xf32>
    %23 = vector.broadcast %22 : vector<1x128xf32> to vector<8x128xf32>
    %24 = arith.mulf %21, %23 : vector<8x128xf32>
    %c1_18 = arith.constant 1 : index
    %c0_19 = arith.constant 0 : index
    %25 = vector.load %arg7[%c1_18, %c0_19] : memref<2x128xf32, #tpu.memory_space<vmem>>, vector<1x128xf32>
    %26 = vector.broadcast %25 : vector<1x128xf32> to vector<8x128xf32>
    %27 = arith.addf %24, %26 : vector<8x128xf32>
    %c0_20 = arith.constant 0 : index
    %c0_21 = arith.constant 0 : index
    %28 = vector.load %arg8[%c0_20, %c0_21] : memref<8x128xf32, #tpu.memory_space<vmem>>, vector<8x128xf32>
    tpu.vector_store %arg8[%c0_20, %c0_21], %27 {strides = array<i32>} : memref<8x128xf32, #tpu.memory_space<vmem>>, vector<8x128xf32>,
    return
  }
  func.func @transform_0(%arg0: i32) -> (i32, i32) {
    %c0_i32 = arith.constant 0 : i32
    %c0_i32_0 = arith.constant 0 : i32
    return %arg0, %c0_i32 : i32, i32
  }
  func.func @transform_1(%arg0: i32) -> (i32, i32) {
    %c0_i32 = arith.constant 0 : i32
    %c0_i32_0 = arith.constant 0 : i32
    %c0_i32_1 = arith.constant 0 : i32
    return %c0_i32, %c0_i32_0 : i32, i32
  }
  func.func @transform_2(%arg0: i32) -> (i32, i32) {
    %c0_i32 = arith.constant 0 : i32
    %c0_i32_0 = arith.constant 0 : i32
    %c0_i32_1 = arith.constant 0 : i32
    return %c0_i32, %c0_i32_0 : i32, i32
  }
  func.func @transform_3(%arg0: i32) -> (i32, i32) {
    %c0_i32 = arith.constant 0 : i32
    %c0_i32_0 = arith.constant 0 : i32
    %c0_i32_1 = arith.constant 0 : i32
    return %c0_i32, %c0_i32_0 : i32, i32
  }
  func.func @transform_4(%arg0: i32) -> (i32, i32) {
    %c0_i32 = arith.constant 0 : i32
    %c0_i32_0 = arith.constant 0 : i32
    %c0_i32_1 = arith.constant 0 : i32
    return %c0_i32, %c0_i32_0 : i32, i32
  }
  func.func @transform_5(%arg0: i32) -> (i32, i32) {
    %c0_i32 = arith.constant 0 : i32
    %c0_i32_0 = arith.constant 0 : i32
    %c0_i32_1 = arith.constant 0 : i32
    return %c0_i32, %c0_i32_0 : i32, i32
  }
  func.func @transform_6(%arg0: i32) -> (i32, i32) {
    %c0_i32 = arith.constant 0 : i32
    %c0_i32_0 = arith.constant 0 : i32
    %c0_i32_1 = arith.constant 0 : i32
    return %c0_i32, %c0_i32_0 : i32, i32
  }
  func.func @transform_7(%arg0: i32) -> (i32, i32) {
    %c0_i32 = arith.constant 0 : i32
    %c0_i32_0 = arith.constant 0 : i32
    return %arg0, %c0_i32 : i32, i32
  }
}

</mosaic_0001>

<llo_original>
// kernel: _ternnet_forward_impl.1
$region0: #{_ternnet_forward_impl.1}
  #allocation0 [shape = 'u32[]', space=smem, size = 0x4, offset = 0x4, fixed_abs, tag = 'smem constant byte address 0x4 - core index']
  #allocation1 [shape = 'u32[72,128]{1,0:T(1,128)}', space=vmem, size = 0x9000, scoped, tag = 'internal scratch']
  %s0 = inlined_call_operand.vmem [shape: f32[8,784], index: 0, kind: input, shape index: {}]
  %s1 = inlined_call_operand.hbm [shape: bf16[784,384], index: 1, kind: input, shape index: {}]
  %s2 = inlined_call_operand.vmem [shape: f32[2,384], index: 2, kind: input, shape index: {}]
  %s3 = inlined_call_operand.hbm [shape: bf16[384,128], index: 3, kind: input, shape index: {}]
  %s4 = inlined_call_operand.vmem [shape: f32[2,128], index: 4, kind: input, shape index: {}]
  %s5 = inlined_call_operand.vmem [shape: bf16[128,128], index: 5, kind: input, shape index: {}]
  %s6 = inlined_call_operand.vmem [shape: f32[2,128], index: 6, kind: input, shape index: {}]
  %s7 = inlined_call_operand.vmem [shape: f32[8,128], index: 7, kind: output, shape index: {}]
  %s8 = sld [smem:[#allocation0]]
  $region46: #{_ternnet_forward_impl.1} parent=0
    _
  %s10 = ssub.s32 1, %s8
  %s11 = scalar_select 0, %s10, %s8
  $region1: #{_ternnet_forward_impl.1} parent=0
    #allocation2 [shape = 'u8[602112]{0}', space=vmem, size = 0x93000, scoped, tag = 'input window, operand 1, single buffered']
    #allocation3 [shape = 's32[1]{0}', space=sflag, size = 0x4, scoped, tag = 'scoped memory for _ternnet_forward_impl.1']
    #allocation4 [shape = 'u8[98304]{0}', space=vmem, size = 0x18000, scoped, tag = 'input window, operand 3, single buffered']
    #allocation5 [shape = 's32[1]{0}', space=sflag, size = 0x4, scoped, tag = 'scoped memory for _ternnet_forward_impl.1']
    %12 = vsyncpa [#allocation3], 0
    %13 = vsyncpa [#allocation5], 0
    // Predicated region
    $region2: #{_ternnet_forward_impl.1} parent=1 // pred_check
      _
    $region3: #{_ternnet_forward_impl.1} parent=1 // pred_check_branch
      %15 = sbr.rel (0) target = $region5
    $region4: #{_ternnet_forward_impl.1} parent=1 // pred_region
      _
    $region5: #{_ternnet_forward_impl.1} parent=1 // pred_fallthru
      _
    // Predicated region
    $region6: #{_ternnet_forward_impl.1} parent=1 // pred_check
      _
    $region7: #{_ternnet_forward_impl.1} parent=1 // pred_check_branch
      %17 = sbr.rel (0) target = $region9
    $region8: #{_ternnet_forward_impl.1} parent=1 // pred_region
      %19 = vsyncadd [#allocation3], 0
      %s20 = sshll.u32 %s1, 4
      %s21 = int_to_ptr.hbm [resolvable:$true] %s20
      %s22 = sshll.u32 [#allocation2], 4
      %s23 = int_to_ptr.vmem [resolvable:$true] %s22
      %28 = dma.hbm_to_vmem [thread:$0]  %s21, 18816, %s23, [#allocation3], 192, 192, 12
    $region9: #{_ternnet_forward_impl.1} parent=1 // pred_fallthru
      _
    // Predicated region
    $region10: #{_ternnet_forward_impl.1} parent=1 // pred_check
      _
    $region11: #{_ternnet_forward_impl.1} parent=1 // pred_check_branch
      %30 = sbr.rel (0) target = $region13
    $region12: #{_ternnet_forward_impl.1} parent=1 // pred_region
      _
    $region13: #{_ternnet_forward_impl.1} parent=1 // pred_fallthru
      _
    // Predicated region
    $region14: #{_ternnet_forward_impl.1} parent=1 // pred_check
      _
    $region15: #{_ternnet_forward_impl.1} parent=1 // pred_check_branch
      %32 = sbr.rel (0) target = $region17
    $region16: #{_ternnet_forward_impl.1} parent=1 // pred_region
      %34 = vsyncadd [#allocation5], 0
      %s35 = sshll.u32 %s3, 4
      %s36 = int_to_ptr.hbm [resolvable:$true] %s35
      %s37 = sshll.u32 [#allocation4], 4
      %s38 = int_to_ptr.vmem [resolvable:$true] %s37
      %43 = dma.hbm_to_vmem [thread:$0]  %s36, 3072, %s38, [#allocation5], 64, 64, 4
    $region17: #{_ternnet_forward_impl.1} parent=1 // pred_fallthru
      _
    // Predicated region
    $region18: #{_ternnet_forward_impl.1} parent=1 // pred_check
      _
    $region19: #{_ternnet_forward_impl.1} parent=1 // pred_check_branch
      %45 = sbr.rel (0) target = $region21
    $region20: #{_ternnet_forward_impl.1} parent=1 // pred_region
      _
    $region21: #{_ternnet_forward_impl.1} parent=1 // pred_fallthru
      _
    // Predicated region
    $region22: #{_ternnet_forward_impl.1} parent=1 // pred_check
      _
    $region23: #{_ternnet_forward_impl.1} parent=1 // pred_check_branch
      %47 = sbr.rel (0) target = $region25
    $region24: #{_ternnet_forward_impl.1} parent=1 // pred_region
      _
    $region25: #{_ternnet_forward_impl.1} parent=1 // pred_fallthru
      _
    // Predicated region
    $region26: #{_ternnet_forward_impl.1} parent=1 // pred_check
      _
    $region27: #{_ternnet_forward_impl.1} parent=1 // pred_check_branch
      %49 = sbr.rel (0) target = $region29
    $region28: #{_ternnet_forward_impl.1} parent=1 // pred_region
      _
    $region29: #{_ternnet_forward_impl.1} parent=1 // pred_fallthru
      _
    // Predicated region
    $region30: #{_ternnet_forward_impl.1} parent=1 // pred_check
      _
    $region31: #{_ternnet_forward_impl.1} parent=1 // pred_check_branch
      %51 = sbr.rel (0) target = $region33
    $region32: #{_ternnet_forward_impl.1} parent=1 // pred_region
      %53 = dma.done [#allocation3], 18816
    $region33: #{_ternnet_forward_impl.1} parent=1 // pred_fallthru
      _
    // Predicated region
    $region34: #{_ternnet_forward_impl.1} parent=1 // pred_check
      _
    $region35: #{_ternnet_forward_impl.1} parent=1 // pred_check_branch
      %55 = sbr.rel (0) target = $region37
    $region36: #{_ternnet_forward_impl.1} parent=1 // pred_region
      %57 = dma.done [#allocation5], 3072
    $region37: #{_ternnet_forward_impl.1} parent=1 // pred_fallthru
      _
    %v59 = vld [vmem:[%s0] sm:$0xff]
    %v60 = vld [vmem:[%s0 + $0x8] sm:$0xff]
    %v61 = vld [vmem:[%s0 + $0x10] sm:$0xff]
    %v62 = vld [vmem:[%s0 + $0x18] sm:$0xff]
    %v63 = vld [vmem:[%s0 + $0x20] sm:$0xff]
    %v64 = vld [vmem:[%s0 + $0x28] sm:$0xff]
    %v65 = vld [vmem:[%s0 + $0x30] sm:$0xff]
    %v66 = vpack.c.bf16 %v59, %v59
    %v67 = vpack.c.bf16 %v60, %v60
    %v68 = vpack.c.bf16 %v61, %v61
    %v69 = vpack.c.bf16 %v62, %v62
    %v70 = vpack.c.bf16 %v63, %v63
    %v71 = vpack.c.bf16 %v64, %v64
    %v72 = vpack.c.bf16 %v65, %v65
    %v73 = vld [vmem:[#allocation2] sm:$0xff]
    %v74 = vld [vmem:[#allocation2 + $0x8] sm:$0xf]
    %v75 = vld [vmem:[#allocation2 + $0xc] sm:$0xff]
    %v76 = vld [vmem:[#allocation2 + $0x14] sm:$0xf]
    %v77 = vld [vmem:[#allocation2 + $0x18] sm:$0xff]
    %v78 = vld [vmem:[#allocation2 + $0x20] sm:$0xf]
    %v79 = vld [vmem:[#allocation2 + $0x24] sm:$0xff]
    %v80 = vld [vmem:[#allocation2 + $0x2c] sm:$0xf]
    %v81 = vld [vmem:[#allocation2 + $0x30] sm:$0xff]
    %v82 = vld [vmem:[#allocation2 + $0x38] sm:$0xf]
    %v83 = vld [vmem:[#allocation2 + $0x3c] sm:$0xff]
    %v84 = vld [vmem:[#allocation2 + $0x44] sm:$0xf]
    %v85 = vld [vmem:[#allocation2 + $0x48] sm:$0xff]
    %v86 = vld [vmem:[#allocation2 + $0x50] sm:$0xf]
    %v87 = vld [vmem:[#allocation2 + $0x54] sm:$0xff]
    %v88 = vld [vmem:[#allocation2 + $0x5c] sm:$0xf]
    %v89 = vld [vmem:[#allocation2 + $0x60] sm:$0xff]
    %v90 = vld [vmem:[#allocation2 + $0x68] sm:$0xf]
    %v91 = vld [vmem:[#allocation2 + $0x6c] sm:$0xff]
    %v92 = vld [vmem:[#allocation2 + $0x74] sm:$0xf]
    %v93 = vld [vmem:[#allocation2 + $0x78] sm:$0xff]
    %v94 = vld [vmem:[#allocation2 + $0x80] sm:$0xf]
    %v95 = vld [vmem:[#allocation2 + $0x84] sm:$0xff]
    %v96 = vld [vmem:[#allocation2 + $0x8c] sm:$0xf]
    %v97 = vld [vmem:[#allocation2 + $0x90] sm:$0xff]
    %v98 = vld [vmem:[#allocation2 + $0x98] sm:$0xf]
    %v99 = vld [vmem:[#allocation2 + $0x9c] sm:$0xff]
    %v100 = vld [vmem:[#allocation2 + $0xa4] sm:$0xf]
    %v101 = vld [vmem:[#allocation2 + $0xa8] sm:$0xff]
    %v102 = vld [vmem:[#allocation2 + $0xb0] sm:$0xf]
    %v103 = vld [vmem:[#allocation2 + $0xb4] sm:$0xff]
    %v104 = vld [vmem:[#allocation2 + $0xbc] sm:$0xf]
    %v105 = vld [vmem:[#allocation2 + $0xc0] sm:$0xff]
    %v106 = vld [vmem:[#allocation2 + $0xc8] sm:$0xf]
    %v107 = vld [vmem:[#allocation2 + $0xcc] sm:$0xff]
    %v108 = vld [vmem:[#allocation2 + $0xd4] sm:$0xf]
    %v109 = vld [vmem:[#allocation2 + $0xd8] sm:$0xff]
    %v110 = vld [vmem:[#allocation2 + $0xe0] sm:$0xf]
    %v111 = vld [vmem:[#allocation2 + $0xe4] sm:$0xff]
    %v112 = vld [vmem:[#allocation2 + $0xec] sm:$0xf]
    %v113 = vld [vmem:[#allocation2 + $0xf0] sm:$0xff]
    %v114 = vld [vmem:[#allocation2 + $0xf8] sm:$0xf]
    %v115 = vld [vmem:[#allocation2 + $0xfc] sm:$0xff]
    %v116 = vld [vmem:[#allocation2 + $0x104] sm:$0xf]
    %v117 = vld [vmem:[#allocation2 + $0x108] sm:$0xff]
    %v118 = vld [vmem:[#allocation2 + $0x110] sm:$0xf]
    %v119 = vld [vmem:[#allocation2 + $0x114] sm:$0xff]
    %v120 = vld [vmem:[#allocation2 + $0x11c] sm:$0xf]
    %v121 = vld [vmem:[#allocation2 + $0x120] sm:$0xff]
    %v122 = vld [vmem:[#allocation2 + $0x128] sm:$0xf]
    %v123 = vld [vmem:[#allocation2 + $0x12c] sm:$0xff]
    %v124 = vld [vmem:[#allocation2 + $0x134] sm:$0xf]
    %v125 = vld [vmem:[#allocation2 + $0x138] sm:$0xff]
    %v126 = vld [vmem:[#allocation2 + $0x140] sm:$0xf]
    %v127 = vld [vmem:[#allocation2 + $0x144] sm:$0xff]
    %v128 = vld [vmem:[#allocation2 + $0x14c] sm:$0xf]
    %v129 = vld [vmem:[#allocation2 + $0x150] sm:$0xff]
    %v130 = vld [vmem:[#allocation2 + $0x158] sm:$0xf]
    %v131 = vld [vmem:[#allocation2 + $0x15c] sm:$0xff]
    %v132 = vld [vmem:[#allocation2 + $0x164] sm:$0xf]
    %v133 = vld [vmem:[#allocation2 + $0x168] sm:$0xff]
    %v134 = vld [vmem:[#allocation2 + $0x170] sm:$0xf]
    %v135 = vld [vmem:[#allocation2 + $0x174] sm:$0xff]
    %v136 = vld [vmem:[#allocation2 + $0x17c] sm:$0xf]
    %v137 = vld [vmem:[#allocation2 + $0x180] sm:$0xff]
    %v138 = vld [vmem:[#allocation2 + $0x188] sm:$0xf]
    %v139 = vld [vmem:[#allocation2 + $0x18c] sm:$0xff]
    %v140 = vld [vmem:[#allocation2 + $0x194] sm:$0xf]
    %v141 = vld [vmem:[#allocation2 + $0x198] sm:$0xff]
    %v142 = vld [vmem:[#allocation2 + $0x1a0] sm:$0xf]
    %v143 = vld [vmem:[#allocation2 + $0x1a4] sm:$0xff]
    %v144 = vld [vmem:[#allocation2 + $0x1ac] sm:$0xf]
    %v145 = vld [vmem:[#allocation2 + $0x1b0] sm:$0xff]
    %v146 = vld [vmem:[#allocation2 + $0x1b8] sm:$0xf]
    %v147 = vld [vmem:[#allocation2 + $0x1bc] sm:$0xff]
    %v148 = vld [vmem:[#allocation2 + $0x1c4] sm:$0xf]
    %v149 = vld [vmem:[#allocation2 + $0x1c8] sm:$0xff]
    %v150 = vld [vmem:[#allocation2 + $0x1d0] sm:$0xf]
    %v151 = vld [vmem:[#allocation2 + $0x1d4] sm:$0xff]
    %v152 = vld [vmem:[#allocation2 + $0x1dc] sm:$0xf]
    %v153 = vld [vmem:[#allocation2 + $0x1e0] sm:$0xff]
    %v154 = vld [vmem:[#allocation2 + $0x1e8] sm:$0xf]
    %v155 = vld [vmem:[#allocation2 + $0x1ec] sm:$0xff]
    %v156 = vld [vmem:[#allocation2 + $0x1f4] sm:$0xf]
    %v157 = vld [vmem:[#allocation2 + $0x1f8] sm:$0xff]
    %v158 = vld [vmem:[#allocation2 + $0x200] sm:$0xf]
    %v159 = vld [vmem:[#allocation2 + $0x204] sm:$0xff]
    %v160 = vld [vmem:[#allocation2 + $0x20c] sm:$0xf]
    %v161 = vld [vmem:[#allocation2 + $0x210] sm:$0xff]
    %v162 = vld [vmem:[#allocation2 + $0x218] sm:$0xf]
    %v163 = vld [vmem:[#allocation2 + $0x21c] sm:$0xff]
    %v164 = vld [vmem:[#allocation2 + $0x224] sm:$0xf]
    %v165 = vld [vmem:[#allocation2 + $0x228] sm:$0xff]
    %v166 = vld [vmem:[#allocation2 + $0x230] sm:$0xf]
    %v167 = vld [vmem:[#allocation2 + $0x234] sm:$0xff]
    %v168 = vld [vmem:[#allocation2 + $0x23c] sm:$0xf]
    %v169 = vld [vmem:[#allocation2 + $0x240] sm:$0xff]
    %v170 = vld [vmem:[#allocation2 + $0x248] sm:$0xf]
    %v171 = vld [vmem:[#allocation2 + $0x24c] sm:$0xff]
    %v172 = vld [vmem:[#allocation2 + $0x254] sm:$0xf]
    %v173 = vld [vmem:[#allocation2 + $0x258] sm:$0xff]
    %v174 = vld [vmem:[#allocation2 + $0x260] sm:$0xf]
    %v175 = vld [vmem:[#allocation2 + $0x264] sm:$0xff]
    %v176 = vld [vmem:[#allocation2 + $0x26c] sm:$0xf]
    %v177 = vld [vmem:[#allocation2 + $0x270] sm:$0xff]
    %v178 = vld [vmem:[#allocation2 + $0x278] sm:$0xf]
    %v179 = vld [vmem:[#allocation2 + $0x27c] sm:$0xff]
    %v180 = vld [vmem:[#allocation2 + $0x284] sm:$0xf]
    %v181 = vld [vmem:[#allocation2 + $0x288] sm:$0xff]
    %v182 = vld [vmem:[#allocation2 + $0x290] sm:$0xf]
    %v183 = vld [vmem:[#allocation2 + $0x294] sm:$0xff]
    %v184 = vld [vmem:[#allocation2 + $0x29c] sm:$0xf]
    %v185 = vld [vmem:[#allocation2 + $0x2a0] sm:$0xff]
    %v186 = vld [vmem:[#allocation2 + $0x2a8] sm:$0xf]
    %v187 = vld [vmem:[#allocation2 + $0x2ac] sm:$0xff]
    %v188 = vld [vmem:[#allocation2 + $0x2b4] sm:$0xf]
    %v189 = vld [vmem:[#allocation2 + $0x2b8] sm:$0xff]
    %v190 = vld [vmem:[#allocation2 + $0x2c0] sm:$0xf]
    %v191 = vld [vmem:[#allocation2 + $0x2c4] sm:$0xff]
    %v192 = vld [vmem:[#allocation2 + $0x2cc] sm:$0xf]
    %v193 = vld [vmem:[#allocation2 + $0x2d0] sm:$0xff]
    %v194 = vld [vmem:[#allocation2 + $0x2d8] sm:$0xf]
    %v195 = vld [vmem:[#allocation2 + $0x2dc] sm:$0xff]
    %v196 = vld [vmem:[#allocation2 + $0x2e4] sm:$0xf]
    %v197 = vld [vmem:[#allocation2 + $0x2e8] sm:$0xff]
    %v198 = vld [vmem:[#allocation2 + $0x2f0] sm:$0xf]
    %v199 = vld [vmem:[#allocation2 + $0x2f4] sm:$0xff]
    %v200 = vld [vmem:[#allocation2 + $0x2fc] sm:$0xf]
    %v201 = vld [vmem:[#allocation2 + $0x300] sm:$0xff]
    %v202 = vld [vmem:[#allocation2 + $0x308] sm:$0xf]
    %v203 = vld [vmem:[#allocation2 + $0x30c] sm:$0xff]
    %v204 = vld [vmem:[#allocation2 + $0x314] sm:$0xf]
    %v205 = vld [vmem:[#allocation2 + $0x318] sm:$0xff]
    %v206 = vld [vmem:[#allocation2 + $0x320] sm:$0xf]
    %v207 = vld [vmem:[#allocation2 + $0x324] sm:$0xff]
    %v208 = vld [vmem:[#allocation2 + $0x32c] sm:$0xf]
    %v209 = vld [vmem:[#allocation2 + $0x330] sm:$0xff]
    %v210 = vld [vmem:[#allocation2 + $0x338] sm:$0xf]
    %v211 = vld [vmem:[#allocation2 + $0x33c] sm:$0xff]
    %v212 = vld [vmem:[#allocation2 + $0x344] sm:$0xf]
    %v213 = vld [vmem:[#allocation2 + $0x348] sm:$0xff]
    %v214 = vld [vmem:[#allocation2 + $0x350] sm:$0xf]
    %v215 = vld [vmem:[#allocation2 + $0x354] sm:$0xff]
    %v216 = vld [vmem:[#allocation2 + $0x35c] sm:$0xf]
    %v217 = vld [vmem:[#allocation2 + $0x360] sm:$0xff]
    %v218 = vld [vmem:[#allocation2 + $0x368] sm:$0xf]
    %v219 = vld [vmem:[#allocation2 + $0x36c] sm:$0xff]
    %v220 = vld [vmem:[#allocation2 + $0x374] sm:$0xf]
    %v221 = vld [vmem:[#allocation2 + $0x378] sm:$0xff]
    %v222 = vld [vmem:[#allocation2 + $0x380] sm:$0xf]
    %v223 = vld [vmem:[#allocation2 + $0x384] sm:$0xff]
    %v224 = vld [vmem:[#allocation2 + $0x38c] sm:$0xf]
    %v225 = vld [vmem:[#allocation2 + $0x390] sm:$0xff]
    %v226 = vld [vmem:[#allocation2 + $0x398] sm:$0xf]
    %v227 = vld [vmem:[#allocation2 + $0x39c] sm:$0xff]
    %v228 = vld [vmem:[#allocation2 + $0x3a4] sm:$0xf]
    %v229 = vld [vmem:[#allocation2 + $0x3a8] sm:$0xff]
    %v230 = vld [vmem:[#allocation2 + $0x3b0] sm:$0xf]
    %v231 = vld [vmem:[#allocation2 + $0x3b4] sm:$0xff]
    %v232 = vld [vmem:[#allocation2 + $0x3bc] sm:$0xf]
    %v233 = vld [vmem:[#allocation2 + $0x3c0] sm:$0xff]
    %v234 = vld [vmem:[#allocation2 + $0x3c8] sm:$0xf]
    %v235 = vld [vmem:[#allocation2 + $0x3cc] sm:$0xff]
    %v236 = vld [vmem:[#allocation2 + $0x3d4] sm:$0xf]
    %v237 = vld [vmem:[#allocation2 + $0x3d8] sm:$0xff]
    %v238 = vld [vmem:[#allocation2 + $0x3e0] sm:$0xf]
    %v239 = vld [vmem:[#allocation2 + $0x3e4] sm:$0xff]
    %v240 = vld [vmem:[#allocation2 + $0x3ec] sm:$0xf]
    %v241 = vld [vmem:[#allocation2 + $0x3f0] sm:$0xff]
    %v242 = vld [vmem:[#allocation2 + $0x3f8] sm:$0xf]
    %v243 = vld [vmem:[#allocation2 + $0x3fc] sm:$0xff]
    %v244 = vld [vmem:[#allocation2 + $0x404] sm:$0xf]
    %v245 = vld [vmem:[#allocation2 + $0x408] sm:$0xff]
    %v246 = vld [vmem:[#allocation2 + $0x410] sm:$0xf]
    %v247 = vld [vmem:[#allocation2 + $0x414] sm:$0xff]
    %v248 = vld [vmem:[#allocation2 + $0x41c] sm:$0xf]
    %v249 = vld [vmem:[#allocation2 + $0x420] sm:$0xff]
    %v250 = vld [vmem:[#allocation2 + $0x428] sm:$0xf]
    %v251 = vld [vmem:[#allocation2 + $0x42c] sm:$0xff]
    %v252 = vld [vmem:[#allocation2 + $0x434] sm:$0xf]
    %v253 = vld [vmem:[#allocation2 + $0x438] sm:$0xff]
    %v254 = vld [vmem:[#allocation2 + $0x440] sm:$0xf]
    %v255 = vld [vmem:[#allocation2 + $0x444] sm:$0xff]
    %v256 = vld [vmem:[#allocation2 + $0x44c] sm:$0xf]
    %v257 = vld [vmem:[#allocation2 + $0x450] sm:$0xff]
    %v258 = vld [vmem:[#allocation2 + $0x458] sm:$0xf]
    %v259 = vld [vmem:[#allocation2 + $0x45c] sm:$0xff]
    %v260 = vld [vmem:[#allocation2 + $0x464] sm:$0xf]
    %v261 = vld [vmem:[#allocation2 + $0x468] sm:$0xff]
    %v262 = vld [vmem:[#allocation2 + $0x470] sm:$0xf]
    %v263 = vld [vmem:[#allocation2 + $0x474] sm:$0xff]
    %v264 = vld [vmem:[#allocation2 + $0x47c] sm:$0xf]
    %v265 = vld [vmem:[#allocation2 + $0x480] sm:$0xff]
    %v266 = vld [vmem:[#allocation2 + $0x488] sm:$0xf]
    %v267 = vld [vmem:[#allocation2 + $0x48c] sm:$0xff]
    %v268 = vld [vmem:[#allocation2 + $0x494] sm:$0xf]
    %v465 = vunpack.c.l.b16 %v73
    %v466 = vunpack.c.h.b16 %v73
    %v467 = vunpack.c.l.b16 %v74
    %v468 = vunpack.c.l.b16 %v75
    %v469 = vunpack.c.h.b16 %v75
    %v470 = vunpack.c.l.b16 %v76
    %v471 = vunpack.c.l.b16 %v77
    %v472 = vunpack.c.h.b16 %v77
    %v473 = vunpack.c.l.b16 %v78
    %v474 = vunpack.c.l.b16 %v79
    %v475 = vunpack.c.h.b16 %v79
    %v476 = vunpack.c.l.b16 %v80
    %v477 = vunpack.c.l.b16 %v81
    %v478 = vunpack.c.h.b16 %v81
    %v479 = vunpack.c.l.b16 %v82
    %v480 = vunpack.c.l.b16 %v83
    %v481 = vunpack.c.h.b16 %v83
    %v482 = vunpack.c.l.b16 %v84
    %v483 = vunpack.c.l.b16 %v85
    %v484 = vunpack.c.h.b16 %v85
    %v485 = vunpack.c.l.b16 %v86
    %v486 = vunpack.c.l.b16 %v87
    %v487 = vunpack.c.h.b16 %v87
    %v488 = vunpack.c.l.b16 %v88
    %v489 = vunpack.c.l.b16 %v89
    %v490 = vunpack.c.h.b16 %v89
    %v491 = vunpack.c.l.b16 %v90
    %v492 = vunpack.c.l.b16 %v91
    %v493 = vunpack.c.h.b16 %v91
    %v494 = vunpack.c.l.b16 %v92
    %v495 = vunpack.c.l.b16 %v93
    %v496 = vunpack.c.h.b16 %v93
    %v497 = vunpack.c.l.b16 %v94
    %v498 = vunpack.c.l.b16 %v95
    %v499 = vunpack.c.h.b16 %v95
    %v500 = vunpack.c.l.b16 %v96
    %v501 = vunpack.c.l.b16 %v97
    %v502 = vunpack.c.h.b16 %v97
    %v503 = vunpack.c.l.b16 %v98
    %v504 = vunpack.c.l.b16 %v99
    %v505 = vunpack.c.h.b16 %v99
    %v506 = vunpack.c.l.b16 %v100
    %v507 = vunpack.c.l.b16 %v101
    %v508 = vunpack.c.h.b16 %v101
    %v509 = vunpack.c.l.b16 %v102
    %v510 = vunpack.c.l.b16 %v103
    %v511 = vunpack.c.h.b16 %v103
    %v512 = vunpack.c.l.b16 %v104
    %v513 = vunpack.c.l.b16 %v105
    %v514 = vunpack.c.h.b16 %v105
    %v515 = vunpack.c.l.b16 %v106
    %v516 = vunpack.c.l.b16 %v107
    %v517 = vunpack.c.h.b16 %v107
    %v518 = vunpack.c.l.b16 %v108
    %v519 = vunpack.c.l.b16 %v109
    %v520 = vunpack.c.h.b16 %v109
    %v521 = vunpack.c.l.b16 %v110
    %v522 = vunpack.c.l.b16 %v111
    %v523 = vunpack.c.h.b16 %v111
    %v524 = vunpack.c.l.b16 %v112
    %v525 = vunpack.c.l.b16 %v113
    %v526 = vunpack.c.h.b16 %v113
    %v527 = vunpack.c.l.b16 %v114
    %v528 = vunpack.c.l.b16 %v115
    %v529 = vunpack.c.h.b16 %v115
    %v530 = vunpack.c.l.b16 %v116
    %v531 = vunpack.c.l.b16 %v117
    %v532 = vunpack.c.h.b16 %v117
    %v533 = vunpack.c.l.b16 %v118
    %v534 = vunpack.c.l.b16 %v119
    %v535 = vunpack.c.h.b16 %v119
    %v536 = vunpack.c.l.b16 %v120
    %v537 = vunpack.c.l.b16 %v121
    %v538 = vunpack.c.h.b16 %v121
    %v539 = vunpack.c.l.b16 %v122
    %v540 = vunpack.c.l.b16 %v123
    %v541 = vunpack.c.h.b16 %v123
    %v542 = vunpack.c.l.b16 %v124
    %v543 = vunpack.c.l.b16 %v125
    %v544 = vunpack.c.h.b16 %v125
    %v545 = vunpack.c.l.b16 %v126
    %v546 = vunpack.c.l.b16 %v127
    %v547 = vunpack.c.h.b16 %v127
    %v548 = vunpack.c.l.b16 %v128
    %v549 = vunpack.c.l.b16 %v129
    %v550 = vunpack.c.h.b16 %v129
    %v551 = vunpack.c.l.b16 %v130
    %v552 = vunpack.c.l.b16 %v131
    %v553 = vunpack.c.h.b16 %v131
    %v554 = vunpack.c.l.b16 %v132
    %v555 = vunpack.c.l.b16 %v133
    %v556 = vunpack.c.h.b16 %v133
    %v557 = vunpack.c.l.b16 %v134
    %v558 = vunpack.c.l.b16 %v135
    %v559 = vunpack.c.h.b16 %v135
    %v560 = vunpack.c.l.b16 %v136
    %v561 = vunpack.c.l.b16 %v137
    %v562 = vunpack.c.h.b16 %v137
    %v563 = vunpack.c.l.b16 %v138
    %v564 = vunpack.c.l.b16 %v139
    %v565 = vunpack.c.h.b16 %v139
    %v566 = vunpack.c.l.b16 %v140
    %v567 = vunpack.c.l.b16 %v141
    %v568 = vunpack.c.h.b16 %v141
    %v569 = vunpack.c.l.b16 %v142
    %v570 = vunpack.c.l.b16 %v143
    %v571 = vunpack.c.h.b16 %v143
    %v572 = vunpack.c.l.b16 %v144
    %v573 = vunpack.c.l.b16 %v145
    %v574 = vunpack.c.h.b16 %v145
    %v575 = vunpack.c.l.b16 %v146
    %v576 = vunpack.c.l.b16 %v147
    %v577 = vunpack.c.h.b16 %v147
    %v578 = vunpack.c.l.b16 %v148
    %v579 = vunpack.c.l.b16 %v149
    %v580 = vunpack.c.h.b16 %v149
    %v581 = vunpack.c.l.b16 %v150
    %v582 = vunpack.c.l.b16 %v151
    %v583 = vunpack.c.h.b16 %v151
    %v584 = vunpack.c.l.b16 %v152
    %v585 = vunpack.c.l.b16 %v153
    %v586 = vunpack.c.h.b16 %v153
    %v587 = vunpack.c.l.b16 %v154
    %v588 = vunpack.c.l.b16 %v155
    %v589 = vunpack.c.h.b16 %v155
    %v590 = vunpack.c.l.b16 %v156
    %v591 = vunpack.c.l.b16 %v157
    %v592 = vunpack.c.h.b16 %v157
    %v593 = vunpack.c.l.b16 %v158
    %v594 = vunpack.c.l.b16 %v159
    %v595 = vunpack.c.h.b16 %v159
    %v596 = vunpack.c.l.b16 %v160
    %v597 = vunpack.c.l.b16 %v161
    %v598 = vunpack.c.h.b16 %v161
    %v599 = vunpack.c.l.b16 %v162
    %v600 = vunpack.c.l.b16 %v163
    %v601 = vunpack.c.h.b16 %v163
    %v602 = vunpack.c.l.b16 %v164
    %v603 = vunpack.c.l.b16 %v165
    %v604 = vunpack.c.h.b16 %v165
    %v605 = vunpack.c.l.b16 %v166
    %v606 = vunpack.c.l.b16 %v167
    %v607 = vunpack.c.h.b16 %v167
    %v608 = vunpack.c.l.b16 %v168
    %v609 = vunpack.c.l.b16 %v169
    %v610 = vunpack.c.h.b16 %v169
    %v611 = vunpack.c.l.b16 %v170
    %v612 = vunpack.c.l.b16 %v171
    %v613 = vunpack.c.h.b16 %v171
    %v614 = vunpack.c.l.b16 %v172
    %v615 = vunpack.c.l.b16 %v173
    %v616 = vunpack.c.h.b16 %v173
    %v617 = vunpack.c.l.b16 %v174
    %v618 = vunpack.c.l.b16 %v175
    %v619 = vunpack.c.h.b16 %v175
    %v620 = vunpack.c.l.b16 %v176
    %v621 = vunpack.c.l.b16 %v177
    %v622 = vunpack.c.h.b16 %v177
    %v623 = vunpack.c.l.b16 %v178
    %v624 = vunpack.c.l.b16 %v179
    %v625 = vunpack.c.h.b16 %v179
    %v626 = vunpack.c.l.b16 %v180
    %v627 = vunpack.c.l.b16 %v181
    %v628 = vunpack.c.h.b16 %v181
    %v629 = vunpack.c.l.b16 %v182
    %v630 = vunpack.c.l.b16 %v183
    %v631 = vunpack.c.h.b16 %v183
    %v632 = vunpack.c.l.b16 %v184
    %v633 = vunpack.c.l.b16 %v185
    %v634 = vunpack.c.h.b16 %v185
    %v635 = vunpack.c.l.b16 %v186
    %v636 = vunpack.c.l.b16 %v187
    %v637 = vunpack.c.h.b16 %v187
    %v638 = vunpack.c.l.b16 %v188
    %v639 = vunpack.c.l.b16 %v189
    %v640 = vunpack.c.h.b16 %v189
    %v641 = vunpack.c.l.b16 %v190
    %v642 = vunpack.c.l.b16 %v191
    %v643 = vunpack.c.h.b16 %v191
    %v644 = vunpack.c.l.b16 %v192
    %v645 = vunpack.c.l.b16 %v193
    %v646 = vunpack.c.h.b16 %v193
    %v647 = vunpack.c.l.b16 %v194
    %v648 = vunpack.c.l.b16 %v195
    %v649 = vunpack.c.h.b16 %v195
    %v650 = vunpack.c.l.b16 %v196
    %v651 = vunpack.c.l.b16 %v197
    %v652 = vunpack.c.h.b16 %v197
    %v653 = vunpack.c.l.b16 %v198
    %v654 = vunpack.c.l.b16 %v199
    %v655 = vunpack.c.h.b16 %v199
    %v656 = vunpack.c.l.b16 %v200
    %v657 = vunpack.c.l.b16 %v201
    %v658 = vunpack.c.h.b16 %v201
    %v659 = vunpack.c.l.b16 %v202
    %v660 = vunpack.c.l.b16 %v203
    %v661 = vunpack.c.h.b16 %v203
    %v662 = vunpack.c.l.b16 %v204
    %v663 = vunpack.c.l.b16 %v205
    %v664 = vunpack.c.h.b16 %v205
    %v665 = vunpack.c.l.b16 %v206
    %v666 = vunpack.c.l.b16 %v207
    %v667 = vunpack.c.h.b16 %v207
    %v668 = vunpack.c.l.b16 %v208
    %v669 = vunpack.c.l.b16 %v209
    %v670 = vunpack.c.h.b16 %v209
    %v671 = vunpack.c.l.b16 %v210
    %v672 = vunpack.c.l.b16 %v211
    %v673 = vunpack.c.h.b16 %v211
    %v674 = vunpack.c.l.b16 %v212
    %v675 = vunpack.c.l.b16 %v213
    %v676 = vunpack.c.h.b16 %v213
    %v677 = vunpack.c.l.b16 %v214
    %v678 = vunpack.c.l.b16 %v215
    %v679 = vunpack.c.h.b16 %v215
    %v680 = vunpack.c.l.b16 %v216
    %v681 = vunpack.c.l.b16 %v217
    %v682 = vunpack.c.h.b16 %v217
    %v683 = vunpack.c.l.b16 %v218
    %v684 = vunpack.c.l.b16 %v219
    %v685 = vunpack.c.h.b16 %v219
    %v686 = vunpack.c.l.b16 %v220
    %v687 = vunpack.c.l.b16 %v221
    %v688 = vunpack.c.h.b16 %v221
    %v689 = vunpack.c.l.b16 %v222
    %v690 = vunpack.c.l.b16 %v223
    %v691 = vunpack.c.h.b16 %v223
    %v692 = vunpack.c.l.b16 %v224
    %v693 = vunpack.c.l.b16 %v225
    %v694 = vunpack.c.h.b16 %v225
    %v695 = vunpack.c.l.b16 %v226
    %v696 = vunpack.c.l.b16 %v227
    %v697 = vunpack.c.h.b16 %v227
    %v698 = vunpack.c.l.b16 %v228
    %v699 = vunpack.c.l.b16 %v229
    %v700 = vunpack.c.h.b16 %v229
    %v701 = vunpack.c.l.b16 %v230
    %v702 = vunpack.c.l.b16 %v231
    %v703 = vunpack.c.h.b16 %v231
    %v704 = vunpack.c.l.b16 %v232
    %v705 = vunpack.c.l.b16 %v233
    %v706 = vunpack.c.h.b16 %v233
    %v707 = vunpack.c.l.b16 %v234
    %v708 = vunpack.c.l.b16 %v235
    %v709 = vunpack.c.h.b16 %v235
    %v710 = vunpack.c.l.b16 %v236
    %v711 = vunpack.c.l.b16 %v237
    %v712 = vunpack.c.h.b16 %v237
    %v713 = vunpack.c.l.b16 %v238
    %v714 = vunpack.c.l.b16 %v239
    %v715 = vunpack.c.h.b16 %v239
    %v716 = vunpack.c.l.b16 %v240
    %v717 = vunpack.c.l.b16 %v241
    %v718 = vunpack.c.h.b16 %v241
    %v719 = vunpack.c.l.b16 %v242
    %v720 = vunpack.c.l.b16 %v243
    %v721 = vunpack.c.h.b16 %v243
    %v722 = vunpack.c.l.b16 %v244
    %v723 = vunpack.c.l.b16 %v245
    %v724 = vunpack.c.h.b16 %v245
    %v725 = vunpack.c.l.b16 %v246
    %v726 = vunpack.c.l.b16 %v247
    %v727 = vunpack.c.h.b16 %v247
    %v728 = vunpack.c.l.b16 %v248
    %v729 = vunpack.c.l.b16 %v249
    %v730 = vunpack.c.h.b16 %v249
    %v731 = vunpack.c.l.b16 %v250
    %v732 = vunpack.c.l.b16 %v251
    %v733 = vunpack.c.h.b16 %v251
    %v734 = vunpack.c.l.b16 %v252
    %v735 = vunpack.c.l.b16 %v253
    %v736 = vunpack.c.h.b16 %v253
    %v737 = vunpack.c.l.b16 %v254
    %v738 = vunpack.c.l.b16 %v255
    %v739 = vunpack.c.h.b16 %v255
    %v740 = vunpack.c.l.b16 %v256
    %v741 = vunpack.c.l.b16 %v257
    %v742 = vunpack.c.h.b16 %v257
    %v743 = vunpack.c.l.b16 %v258
    %v744 = vunpack.c.l.b16 %v259
    %v745 = vunpack.c.h.b16 %v259
    %v746 = vunpack.c.l.b16 %v260
    %v747 = vunpack.c.l.b16 %v261
    %v748 = vunpack.c.h.b16 %v261
    %v749 = vunpack.c.l.b16 %v262
    %v750 = vunpack.c.l.b16 %v263
    %v751 = vunpack.c.h.b16 %v263
    %v752 = vunpack.c.l.b16 %v264
    %v753 = vunpack.c.l.b16 %v265
    %v754 = vunpack.c.h.b16 %v265
    %v755 = vunpack.c.l.b16 %v266
    %v756 = vunpack.c.l.b16 %v267
    %v757 = vunpack.c.h.b16 %v267
    %v758 = vunpack.c.l.b16 %v268
    %v759 = vpack.c.b16 %v468, %v465
    %v760 = vpack.c.b16 %v469, %v466
    %v761 = vpack.c.b16 %v470, %v467
    %v762 = vpack.c.b16 %v474, %v471
    %v763 = vpack.c.b16 %v475, %v472
    %v764 = vpack.c.b16 %v476, %v473
    %v765 = vpack.c.b16 %v480, %v477
    %v766 = vpack.c.b16 %v481, %v478
    %v767 = vpack.c.b16 %v482, %v479
    %v768 = vpack.c.b16 %v486, %v483
    %v769 = vpack.c.b16 %v487, %v484
    %v770 = vpack.c.b16 %v488, %v485
    %v771 = vpack.c.b16 %v492, %v489
    %v772 = vpack.c.b16 %v493, %v490
    %v773 = vpack.c.b16 %v494, %v491
    %v774 = vpack.c.b16 %v498, %v495
    %v775 = vpack.c.b16 %v499, %v496
    %v776 = vpack.c.b16 %v500, %v497
    %v777 = vpack.c.b16 %v504, %v501
    %v778 = vpack.c.b16 %v505, %v502
    %v779 = vpack.c.b16 %v506, %v503
    %v780 = vpack.c.b16 %v510, %v507
    %v781 = vpack.c.b16 %v511, %v508
    %v782 = vpack.c.b16 %v512, %v509
    %v783 = vpack.c.b16 %v516, %v513
    %v784 = vpack.c.b16 %v517, %v514
    %v785 = vpack.c.b16 %v518, %v515
    %v786 = vpack.c.b16 %v522, %v519
    %v787 = vpack.c.b16 %v523, %v520
    %v788 = vpack.c.b16 %v524, %v521
    %v789 = vpack.c.b16 %v528, %v525
    %v790 = vpack.c.b16 %v529, %v526
    %v791 = vpack.c.b16 %v530, %v527
    %v792 = vpack.c.b16 %v534, %v531
    %v793 = vpack.c.b16 %v535, %v532
    %v794 = vpack.c.b16 %v536, %v533
    %v795 = vpack.c.b16 %v540, %v537
    %v796 = vpack.c.b16 %v541, %v538
    %v797 = vpack.c.b16 %v542, %v539
    %v798 = vpack.c.b16 %v546, %v543
    %v799 = vpack.c.b16 %v547, %v544
    %v800 = vpack.c.b16 %v548, %v545
    %v801 = vpack.c.b16 %v552, %v549
    %v802 = vpack.c.b16 %v553, %v550
    %v803 = vpack.c.b16 %v554, %v551
    %v804 = vpack.c.b16 %v558, %v555
    %v805 = vpack.c.b16 %v559, %v556
    %v806 = vpack.c.b16 %v560, %v557
    %v807 = vpack.c.b16 %v564, %v561
    %v808 = vpack.c.b16 %v565, %v562
    %v809 = vpack.c.b16 %v566, %v563
    %v810 = vpack.c.b16 %v570, %v567
    %v811 = vpack.c.b16 %v571, %v568
    %v812 = vpack.c.b16 %v572, %v569
    %v813 = vpack.c.b16 %v576, %v573
    %v814 = vpack.c.b16 %v577, %v574
    %v815 = vpack.c.b16 %v578, %v575
    %v816 = vpack.c.b16 %v582, %v579
    %v817 = vpack.c.b16 %v583, %v580
    %v818 = vpack.c.b16 %v584, %v581
    %v819 = vpack.c.b16 %v588, %v585
    %v820 = vpack.c.b16 %v589, %v586
    %v821 = vpack.c.b16 %v590, %v587
    %v822 = vpack.c.b16 %v594, %v591
    %v823 = vpack.c.b16 %v595, %v592
    %v824 = vpack.c.b16 %v596, %v593
    %v825 = vpack.c.b16 %v600, %v597
    %v826 = vpack.c.b16 %v601, %v598
    %v827 = vpack.c.b16 %v602, %v599
    %v828 = vpack.c.b16 %v606, %v603
    %v829 = vpack.c.b16 %v607, %v604
    %v830 = vpack.c.b16 %v608, %v605
    %v831 = vpack.c.b16 %v612, %v609
    %v832 = vpack.c.b16 %v613, %v610
    %v833 = vpack.c.b16 %v614, %v611
    %v834 = vpack.c.b16 %v618, %v615
    %v835 = vpack.c.b16 %v619, %v616
    %v836 = vpack.c.b16 %v620, %v617
    %v837 = vpack.c.b16 %v624, %v621
    %v838 = vpack.c.b16 %v625, %v622
    %v839 = vpack.c.b16 %v626, %v623
    %v840 = vpack.c.b16 %v630, %v627
    %v841 = vpack.c.b16 %v631, %v628
    %v842 = vpack.c.b16 %v632, %v629
    %v843 = vpack.c.b16 %v636, %v633
    %v844 = vpack.c.b16 %v637, %v634
    %v845 = vpack.c.b16 %v638, %v635
    %v846 = vpack.c.b16 %v642, %v639
    %v847 = vpack.c.b16 %v643, %v640
    %v848 = vpack.c.b16 %v644, %v641
    %v849 = vpack.c.b16 %v648, %v645
    %v850 = vpack.c.b16 %v649, %v646
    %v851 = vpack.c.b16 %v650, %v647
    %v852 = vpack.c.b16 %v654, %v651
    %v853 = vpack.c.b16 %v655, %v652
    %v854 = vpack.c.b16 %v656, %v653
    %v855 = vpack.c.b16 %v660, %v657
    %v856 = vpack.c.b16 %v661, %v658
    %v857 = vpack.c.b16 %v662, %v659
    %v858 = vpack.c.b16 %v666, %v663
    %v859 = vpack.c.b16 %v667, %v664
    %v860 = vpack.c.b16 %v668, %v665
    %v861 = vpack.c.b16 %v672, %v669
    %v862 = vpack.c.b16 %v673, %v670
    %v863 = vpack.c.b16 %v674, %v671
    %v864 = vpack.c.b16 %v678, %v675
    %v865 = vpack.c.b16 %v679, %v676
    %v866 = vpack.c.b16 %v680, %v677
    %v867 = vpack.c.b16 %v684, %v681
    %v868 = vpack.c.b16 %v685, %v682
    %v869 = vpack.c.b16 %v686, %v683
    %v870 = vpack.c.b16 %v690, %v687
    %v871 = vpack.c.b16 %v691, %v688
    %v872 = vpack.c.b16 %v692, %v689
    %v873 = vpack.c.b16 %v696, %v693
    %v874 = vpack.c.b16 %v697, %v694
    %v875 = vpack.c.b16 %v698, %v695
    %v876 = vpack.c.b16 %v702, %v699
    %v877 = vpack.c.b16 %v703, %v700
    %v878 = vpack.c.b16 %v704, %v701
    %v879 = vpack.c.b16 %v708, %v705
    %v880 = vpack.c.b16 %v709, %v706
    %v881 = vpack.c.b16 %v710, %v707
    %v882 = vpack.c.b16 %v714, %v711
    %v883 = vpack.c.b16 %v715, %v712
    %v884 = vpack.c.b16 %v716, %v713
    %v885 = vpack.c.b16 %v720, %v717
    %v886 = vpack.c.b16 %v721, %v718
    %v887 = vpack.c.b16 %v722, %v719
    %v888 = vpack.c.b16 %v726, %v723
    %v889 = vpack.c.b16 %v727, %v724
    %v890 = vpack.c.b16 %v728, %v725
    %v891 = vpack.c.b16 %v732, %v729
    %v892 = vpack.c.b16 %v733, %v730
    %v893 = vpack.c.b16 %v734, %v731
    %v894 = vpack.c.b16 %v738, %v735
    %v895 = vpack.c.b16 %v739, %v736
    %v896 = vpack.c.b16 %v740, %v737
    %v897 = vpack.c.b16 %v744, %v741
    %v898 = vpack.c.b16 %v745, %v742
    %v899 = vpack.c.b16 %v746, %v743
    %v900 = vpack.c.b16 %v750, %v747
    %v901 = vpack.c.b16 %v751, %v748
    %v902 = vpack.c.b16 %v752, %v749
    %v903 = vpack.c.b16 %v756, %v753
    %v904 = vpack.c.b16 %v757, %v754
    %v905 = vpack.c.b16 %v758, %v755
    %vm1053 = vcmask 130048
    %v1055 = vsel %vm1053, %v72, 0
    %1057 = vmatpush.bf16.msra.mxu0 %v780
    %1058 = vmatpush.bf16.msra.mxu0 %v777
    %1059 = vmatpush.bf16.msra.mxu0 %v774
    %1060 = vmatpush.bf16.msra.mxu0 %v771
    %1061 = vmatpush.bf16.msra.mxu0 %v768
    %1062 = vmatpush.bf16.msra.mxu0 %v765
    %1063 = vmatpush.bf16.msra.mxu0 %v762
    %1064 = vmatpush.bf16.msra.mxu0 %v759
    %1065 = vmatmul.bf16.gmra.mxu0 %v66
    %v1066 = vpop.f32.mrf.mxu0
    %v1067 = vadd.f32 0.0, %v1066
    %v1068 = vpop.f32.mrf.mxu0
    %1069 = vdwg.mxu0
    %1070 = vmatpush.bf16.msra.mxu0 %v804
    %1071 = vmatpush.bf16.msra.mxu0 %v801
    %1072 = vmatpush.bf16.msra.mxu0 %v798
    %1073 = vmatpush.bf16.msra.mxu0 %v795
    %1074 = vmatpush.bf16.msra.mxu0 %v792
    %1075 = vmatpush.bf16.msra.mxu0 %v789
    %1076 = vmatpush.bf16.msra.mxu0 %v786
    %1077 = vmatpush.bf16.msra.mxu0 %v783
    %1078 = vmatmul.bf16.gmra.mxu0 %v67
    %v1079 = vpop.f32.mrf.mxu0
    %v1080 = vadd.f32 %v1067, %v1079
    %v1081 = vpop.f32.mrf.mxu0
    %1082 = vdwg.mxu0
    %1083 = vmatpush.bf16.msra.mxu0 %v828
    %1084 = vmatpush.bf16.msra.mxu0 %v825
    %1085 = vmatpush.bf16.msra.mxu0 %v822
    %1086 = vmatpush.bf16.msra.mxu0 %v819
    %1087 = vmatpush.bf16.msra.mxu0 %v816
    %1088 = vmatpush.bf16.msra.mxu0 %v813
    %1089 = vmatpush.bf16.msra.mxu0 %v810
    %1090 = vmatpush.bf16.msra.mxu0 %v807
    %1091 = vmatmul.bf16.gmra.mxu0 %v68
    %v1092 = vpop.f32.mrf.mxu0
    %v1093 = vadd.f32 %v1080, %v1092
    %v1094 = vpop.f32.mrf.mxu0
    %1095 = vdwg.mxu0
    %1096 = vmatpush.bf16.msra.mxu0 %v852
    %1097 = vmatpush.bf16.msra.mxu0 %v849
    %1098 = vmatpush.bf16.msra.mxu0 %v846
    %1099 = vmatpush.bf16.msra.mxu0 %v843
    %1100 = vmatpush.bf16.msra.mxu0 %v840
    %1101 = vmatpush.bf16.msra.mxu0 %v837
    %1102 = vmatpush.bf16.msra.mxu0 %v834
    %1103 = vmatpush.bf16.msra.mxu0 %v831
    %1104 = vmatmul.bf16.gmra.mxu0 %v69
    %v1105 = vpop.f32.mrf.mxu0
    %v1106 = vadd.f32 %v1093, %v1105
    %v1107 = vpop.f32.mrf.mxu0
    %1108 = vdwg.mxu0
    %1109 = vmatpush.bf16.msra.mxu0 %v876
    %1110 = vmatpush.bf16.msra.mxu0 %v873
    %1111 = vmatpush.bf16.msra.mxu0 %v870
    %1112 = vmatpush.bf16.msra.mxu0 %v867
    %1113 = vmatpush.bf16.msra.mxu0 %v864
    %1114 = vmatpush.bf16.msra.mxu0 %v861
    %1115 = vmatpush.bf16.msra.mxu0 %v858
    %1116 = vmatpush.bf16.msra.mxu0 %v855
    %1117 = vmatmul.bf16.gmra.mxu0 %v70
    %v1118 = vpop.f32.mrf.mxu0
    %v1119 = vadd.f32 %v1106, %v1118
    %v1120 = vpop.f32.mrf.mxu0
    %1121 = vdwg.mxu0
    %1122 = vmatpush.bf16.msra.mxu0 %v900
    %1123 = vmatpush.bf16.msra.mxu0 %v897
    %1124 = vmatpush.bf16.msra.mxu0 %v894
    %1125 = vmatpush.bf16.msra.mxu0 %v891
    %1126 = vmatpush.bf16.msra.mxu0 %v888
    %1127 = vmatpush.bf16.msra.mxu0 %v885
    %1128 = vmatpush.bf16.msra.mxu0 %v882
    %1129 = vmatpush.bf16.msra.mxu0 %v879
    %1130 = vmatmul.bf16.gmra.mxu0 %v71
    %v1131 = vpop.f32.mrf.mxu0
    %v1132 = vadd.f32 %v1119, %v1131
    %v1133 = vpop.f32.mrf.mxu0
    %1134 = vdwg.mxu0
    %1135 = vmatpush.bf16.msra.mxu0 0
    %1136 = vmatpush.bf16.msra.mxu0 0
    %1137 = vmatpush.bf16.msra.mxu0 0
    %1138 = vmatpush.bf16.msra.mxu0 0
    %1139 = vmatpush.bf16.msra.mxu0 0
    %1140 = vmatpush.bf16.msra.mxu0 0
    %1141 = vmatpush.bf16.msra.mxu0 0
    %1142 = vmatpush.bf16.msra.mxu0 %v903
    %1143 = vmatmul.bf16.gmra.mxu0 %v1055
    %v1144 = vpop.f32.mrf.mxu0
    %v1145 = vadd.f32 %v1132, %v1144
    %v1146 = vpop.f32.mrf.mxu0
    %1147 = vdwg.mxu0
    %1148 = vmatpush.bf16.msra.mxu0 %v781
    %1149 = vmatpush.bf16.msra.mxu0 %v778
    %1150 = vmatpush.bf16.msra.mxu0 %v775
    %1151 = vmatpush.bf16.msra.mxu0 %v772
    %1152 = vmatpush.bf16.msra.mxu0 %v769
    %1153 = vmatpush.bf16.msra.mxu0 %v766
    %1154 = vmatpush.bf16.msra.mxu0 %v763
    %1155 = vmatpush.bf16.msra.mxu0 %v760
    %1156 = vmatmul.bf16.gmra.mxu0 %v66
    %v1157 = vpop.f32.mrf.mxu0
    %v1158 = vadd.f32 0.0, %v1157
    %v1159 = vpop.f32.mrf.mxu0
    %1160 = vdwg.mxu0
    %1161 = vmatpush.bf16.msra.mxu0 %v805
    %1162 = vmatpush.bf16.msra.mxu0 %v802
    %1163 = vmatpush.bf16.msra.mxu0 %v799
    %1164 = vmatpush.bf16.msra.mxu0 %v796
    %1165 = vmatpush.bf16.msra.mxu0 %v793
    %1166 = vmatpush.bf16.msra.mxu0 %v790
    %1167 = vmatpush.bf16.msra.mxu0 %v787
    %1168 = vmatpush.bf16.msra.mxu0 %v784
    %1169 = vmatmul.bf16.gmra.mxu0 %v67
    %v1170 = vpop.f32.mrf.mxu0
    %v1171 = vadd.f32 %v1158, %v1170
    %v1172 = vpop.f32.mrf.mxu0
    %1173 = vdwg.mxu0
    %1174 = vmatpush.bf16.msra.mxu0 %v829
    %1175 = vmatpush.bf16.msra.mxu0 %v826
    %1176 = vmatpush.bf16.msra.mxu0 %v823
    %1177 = vmatpush.bf16.msra.mxu0 %v820
    %1178 = vmatpush.bf16.msra.mxu0 %v817
    %1179 = vmatpush.bf16.msra.mxu0 %v814
    %1180 = vmatpush.bf16.msra.mxu0 %v811
    %1181 = vmatpush.bf16.msra.mxu0 %v808
    %1182 = vmatmul.bf16.gmra.mxu0 %v68
    %v1183 = vpop.f32.mrf.mxu0
    %v1184 = vadd.f32 %v1171, %v1183
    %v1185 = vpop.f32.mrf.mxu0
    %1186 = vdwg.mxu0
    %1187 = vmatpush.bf16.msra.mxu0 %v853
    %1188 = vmatpush.bf16.msra.mxu0 %v850
    %1189 = vmatpush.bf16.msra.mxu0 %v847
    %1190 = vmatpush.bf16.msra.mxu0 %v844
    %1191 = vmatpush.bf16.msra.mxu0 %v841
    %1192 = vmatpush.bf16.msra.mxu0 %v838
    %1193 = vmatpush.bf16.msra.mxu0 %v835
    %1194 = vmatpush.bf16.msra.mxu0 %v832
    %1195 = vmatmul.bf16.gmra.mxu0 %v69
    %v1196 = vpop.f32.mrf.mxu0
    %v1197 = vadd.f32 %v1184, %v1196
    %v1198 = vpop.f32.mrf.mxu0
    %1199 = vdwg.mxu0
    %1200 = vmatpush.bf16.msra.mxu0 %v877
    %1201 = vmatpush.bf16.msra.mxu0 %v874
    %1202 = vmatpush.bf16.msra.mxu0 %v871
    %1203 = vmatpush.bf16.msra.mxu0 %v868
    %1204 = vmatpush.bf16.msra.mxu0 %v865
    %1205 = vmatpush.bf16.msra.mxu0 %v862
    %1206 = vmatpush.bf16.msra.mxu0 %v859
    %1207 = vmatpush.bf16.msra.mxu0 %v856
    %1208 = vmatmul.bf16.gmra.mxu0 %v70
    %v1209 = vpop.f32.mrf.mxu0
    %v1210 = vadd.f32 %v1197, %v1209
    %v1211 = vpop.f32.mrf.mxu0
    %1212 = vdwg.mxu0
    %1213 = vmatpush.bf16.msra.mxu0 %v901
    %1214 = vmatpush.bf16.msra.mxu0 %v898
    %1215 = vmatpush.bf16.msra.mxu0 %v895
    %1216 = vmatpush.bf16.msra.mxu0 %v892
    %1217 = vmatpush.bf16.msra.mxu0 %v889
    %1218 = vmatpush.bf16.msra.mxu0 %v886
    %1219 = vmatpush.bf16.msra.mxu0 %v883
    %1220 = vmatpush.bf16.msra.mxu0 %v880
    %1221 = vmatmul.bf16.gmra.mxu0 %v71
    %v1222 = vpop.f32.mrf.mxu0
    %v1223 = vadd.f32 %v1210, %v1222
    %v1224 = vpop.f32.mrf.mxu0
    %1225 = vdwg.mxu0
    %1226 = vmatpush.bf16.msra.mxu0 0
    %1227 = vmatpush.bf16.msra.mxu0 0
    %1228 = vmatpush.bf16.msra.mxu0 0
    %1229 = vmatpush.bf16.msra.mxu0 0
    %1230 = vmatpush.bf16.msra.mxu0 0
    %1231 = vmatpush.bf16.msra.mxu0 0
    %1232 = vmatpush.bf16.msra.mxu0 0
    %1233 = vmatpush.bf16.msra.mxu0 %v904
    %1234 = vmatmul.bf16.gmra.mxu0 %v1055
    %v1235 = vpop.f32.mrf.mxu0
    %v1236 = vadd.f32 %v1223, %v1235
    %v1237 = vpop.f32.mrf.mxu0
    %1238 = vdwg.mxu0
    %1239 = vmatpush.bf16.msra.mxu0 %v782
    %1240 = vmatpush.bf16.msra.mxu0 %v779
    %1241 = vmatpush.bf16.msra.mxu0 %v776
    %1242 = vmatpush.bf16.msra.mxu0 %v773
    %1243 = vmatpush.bf16.msra.mxu0 %v770
    %1244 = vmatpush.bf16.msra.mxu0 %v767
    %1245 = vmatpush.bf16.msra.mxu0 %v764
    %1246 = vmatpush.bf16.msra.mxu0 %v761
    %1247 = vmatmul.bf16.gmra.mxu0 %v66
    %v1248 = vpop.f32.mrf.mxu0
    %v1249 = vadd.f32 0.0, %v1248
    %v1250 = vpop.f32.mrf.mxu0
    %1251 = vdwg.mxu0
    %1252 = vmatpush.bf16.msra.mxu0 %v806
    %1253 = vmatpush.bf16.msra.mxu0 %v803
    %1254 = vmatpush.bf16.msra.mxu0 %v800
    %1255 = vmatpush.bf16.msra.mxu0 %v797
    %1256 = vmatpush.bf16.msra.mxu0 %v794
    %1257 = vmatpush.bf16.msra.mxu0 %v791
    %1258 = vmatpush.bf16.msra.mxu0 %v788
    %1259 = vmatpush.bf16.msra.mxu0 %v785
    %1260 = vmatmul.bf16.gmra.mxu0 %v67
    %v1261 = vpop.f32.mrf.mxu0
    %v1262 = vadd.f32 %v1249, %v1261
    %v1263 = vpop.f32.mrf.mxu0
    %1264 = vdwg.mxu0
    %1265 = vmatpush.bf16.msra.mxu0 %v830
    %1266 = vmatpush.bf16.msra.mxu0 %v827
    %1267 = vmatpush.bf16.msra.mxu0 %v824
    %1268 = vmatpush.bf16.msra.mxu0 %v821
    %1269 = vmatpush.bf16.msra.mxu0 %v818
    %1270 = vmatpush.bf16.msra.mxu0 %v815
    %1271 = vmatpush.bf16.msra.mxu0 %v812
    %1272 = vmatpush.bf16.msra.mxu0 %v809
    %1273 = vmatmul.bf16.gmra.mxu0 %v68
    %v1274 = vpop.f32.mrf.mxu0
    %v1275 = vadd.f32 %v1262, %v1274
    %v1276 = vpop.f32.mrf.mxu0
    %1277 = vdwg.mxu0
    %1278 = vmatpush.bf16.msra.mxu0 %v854
    %1279 = vmatpush.bf16.msra.mxu0 %v851
    %1280 = vmatpush.bf16.msra.mxu0 %v848
    %1281 = vmatpush.bf16.msra.mxu0 %v845
    %1282 = vmatpush.bf16.msra.mxu0 %v842
    %1283 = vmatpush.bf16.msra.mxu0 %v839
    %1284 = vmatpush.bf16.msra.mxu0 %v836
    %1285 = vmatpush.bf16.msra.mxu0 %v833
    %1286 = vmatmul.bf16.gmra.mxu0 %v69
    %v1287 = vpop.f32.mrf.mxu0
    %v1288 = vadd.f32 %v1275, %v1287
    %v1289 = vpop.f32.mrf.mxu0
    %1290 = vdwg.mxu0
    %1291 = vmatpush.bf16.msra.mxu0 %v878
    %1292 = vmatpush.bf16.msra.mxu0 %v875
    %1293 = vmatpush.bf16.msra.mxu0 %v872
    %1294 = vmatpush.bf16.msra.mxu0 %v869
    %1295 = vmatpush.bf16.msra.mxu0 %v866
    %1296 = vmatpush.bf16.msra.mxu0 %v863
    %1297 = vmatpush.bf16.msra.mxu0 %v860
    %1298 = vmatpush.bf16.msra.mxu0 %v857
    %1299 = vmatmul.bf16.gmra.mxu0 %v70
    %v1300 = vpop.f32.mrf.mxu0
    %v1301 = vadd.f32 %v1288, %v1300
    %v1302 = vpop.f32.mrf.mxu0
    %1303 = vdwg.mxu0
    %1304 = vmatpush.bf16.msra.mxu0 %v902
    %1305 = vmatpush.bf16.msra.mxu0 %v899
    %1306 = vmatpush.bf16.msra.mxu0 %v896
    %1307 = vmatpush.bf16.msra.mxu0 %v893
    %1308 = vmatpush.bf16.msra.mxu0 %v890
    %1309 = vmatpush.bf16.msra.mxu0 %v887
    %1310 = vmatpush.bf16.msra.mxu0 %v884
    %1311 = vmatpush.bf16.msra.mxu0 %v881
    %1312 = vmatmul.bf16.gmra.mxu0 %v71
    %v1313 = vpop.f32.mrf.mxu0
    %v1314 = vadd.f32 %v1301, %v1313
    %v1315 = vpop.f32.mrf.mxu0
    %1316 = vdwg.mxu0
    %1317 = vmatpush.bf16.msra.mxu0 0
    %1318 = vmatpush.bf16.msra.mxu0 0
    %1319 = vmatpush.bf16.msra.mxu0 0
    %1320 = vmatpush.bf16.msra.mxu0 0
    %1321 = vmatpush.bf16.msra.mxu0 0
    %1322 = vmatpush.bf16.msra.mxu0 0
    %1323 = vmatpush.bf16.msra.mxu0 0
    %1324 = vmatpush.bf16.msra.mxu0 %v905
    %1325 = vmatmul.bf16.gmra.mxu0 %v1055
    %v1326 = vpop.f32.mrf.mxu0
    %v1327 = vadd.f32 %v1314, %v1326
    %v1328 = vpop.f32.mrf.mxu0
    %1329 = vdwg.mxu0
    %v1330 = vld [vmem:[%s2] ss:$2 sm:$0x7]
    %v1332 = vperm.slane %v1330, 0
    %v1333 = vperm.slane %v1330, 1
    %v1334 = vperm.slane %v1330, 2
    %v1338 = vmul.f32 %v1145, %v1332
    %v1339 = vmul.f32 %v1236, %v1333
    %v1340 = vmul.f32 %v1327, %v1334
    %s1341 = scalar_lea.vmem %s2, 1
    %v1342 = vld [vmem:[%s1341] ss:$2 sm:$0x7]
    %v1344 = vperm.slane %v1342, 0
    %v1345 = vperm.slane %v1342, 1
    %v1346 = vperm.slane %v1342, 2
    %v1350 = vadd.f32 %v1338, %v1344
    %v1351 = vadd.f32 %v1339, %v1345
    %v1352 = vadd.f32 %v1340, %v1346
    %v1353 = vpack.c.bf16 %v1350, %v1350
    %v1354 = vpack.c.bf16 %v1351, %v1351
    %v1355 = vpack.c.bf16 %v1352, %v1352
    %v1356 = vld [vmem:[#allocation4] sm:$0xf]
    %v1357 = vld [vmem:[#allocation4 + $0x4] sm:$0xf]
    %v1358 = vld [vmem:[#allocation4 + $0x8] sm:$0xf]
    %v1359 = vld [vmem:[#allocation4 + $0xc] sm:$0xf]
    %v1360 = vld [vmem:[#allocation4 + $0x10] sm:$0xf]
    %v1361 = vld [vmem:[#allocation4 + $0x14] sm:$0xf]
    %v1362 = vld [vmem:[#allocation4 + $0x18] sm:$0xf]
    %v1363 = vld [vmem:[#allocation4 + $0x1c] sm:$0xf]
    %v1364 = vld [vmem:[#allocation4 + $0x20] sm:$0xf]
    %v1365 = vld [vmem:[#allocation4 + $0x24] sm:$0xf]
    %v1366 = vld [vmem:[#allocation4 + $0x28] sm:$0xf]
    %v1367 = vld [vmem:[#allocation4 + $0x2c] sm:$0xf]
    %v1368 = vld [vmem:[#allocation4 + $0x30] sm:$0xf]
    %v1369 = vld [vmem:[#allocation4 + $0x34] sm:$0xf]
    %v1370 = vld [vmem:[#allocation4 + $0x38] sm:$0xf]
    %v1371 = vld [vmem:[#allocation4 + $0x3c] sm:$0xf]
    %v1372 = vld [vmem:[#allocation4 + $0x40] sm:$0xf]
    %v1373 = vld [vmem:[#allocation4 + $0x44] sm:$0xf]
    %v1374 = vld [vmem:[#allocation4 + $0x48] sm:$0xf]
    %v1375 = vld [vmem:[#allocation4 + $0x4c] sm:$0xf]
    %v1376 = vld [vmem:[#allocation4 + $0x50] sm:$0xf]
    %v1377 = vld [vmem:[#allocation4 + $0x54] sm:$0xf]
    %v1378 = vld [vmem:[#allocation4 + $0x58] sm:$0xf]
    %v1379 = vld [vmem:[#allocation4 + $0x5c] sm:$0xf]
    %v1380 = vld [vmem:[#allocation4 + $0x60] sm:$0xf]
    %v1381 = vld [vmem:[#allocation4 + $0x64] sm:$0xf]
    %v1382 = vld [vmem:[#allocation4 + $0x68] sm:$0xf]
    %v1383 = vld [vmem:[#allocation4 + $0x6c] sm:$0xf]
    %v1384 = vld [vmem:[#allocation4 + $0x70] sm:$0xf]
    %v1385 = vld [vmem:[#allocation4 + $0x74] sm:$0xf]
    %v1386 = vld [vmem:[#allocation4 + $0x78] sm:$0xf]
    %v1387 = vld [vmem:[#allocation4 + $0x7c] sm:$0xf]
    %v1388 = vld [vmem:[#allocation4 + $0x80] sm:$0xf]
    %v1389 = vld [vmem:[#allocation4 + $0x84] sm:$0xf]
    %v1390 = vld [vmem:[#allocation4 + $0x88] sm:$0xf]
    %v1391 = vld [vmem:[#allocation4 + $0x8c] sm:$0xf]
    %v1392 = vld [vmem:[#allocation4 + $0x90] sm:$0xf]
    %v1393 = vld [vmem:[#allocation4 + $0x94] sm:$0xf]
    %v1394 = vld [vmem:[#allocation4 + $0x98] sm:$0xf]
    %v1395 = vld [vmem:[#allocation4 + $0x9c] sm:$0xf]
    %v1396 = vld [vmem:[#allocation4 + $0xa0] sm:$0xf]
    %v1397 = vld [vmem:[#allocation4 + $0xa4] sm:$0xf]
    %v1398 = vld [vmem:[#allocation4 + $0xa8] sm:$0xf]
    %v1399 = vld [vmem:[#allocation4 + $0xac] sm:$0xf]
    %v1400 = vld [vmem:[#allocation4 + $0xb0] sm:$0xf]
    %v1401 = vld [vmem:[#allocation4 + $0xb4] sm:$0xf]
    %v1402 = vld [vmem:[#allocation4 + $0xb8] sm:$0xf]
    %v1403 = vld [vmem:[#allocation4 + $0xbc] sm:$0xf]
    %v1452 = vunpack.c.l.b16 %v1356
    %v1453 = vunpack.c.l.b16 %v1357
    %v1454 = vunpack.c.l.b16 %v1358
    %v1455 = vunpack.c.l.b16 %v1359
    %v1456 = vunpack.c.l.b16 %v1360
    %v1457 = vunpack.c.l.b16 %v1361
    %v1458 = vunpack.c.l.b16 %v1362
    %v1459 = vunpack.c.l.b16 %v1363
    %v1460 = vunpack.c.l.b16 %v1364
    %v1461 = vunpack.c.l.b16 %v1365
    %v1462 = vunpack.c.l.b16 %v1366
    %v1463 = vunpack.c.l.b16 %v1367
    %v1464 = vunpack.c.l.b16 %v1368
    %v1465 = vunpack.c.l.b16 %v1369
    %v1466 = vunpack.c.l.b16 %v1370
    %v1467 = vunpack.c.l.b16 %v1371
    %v1468 = vunpack.c.l.b16 %v1372
    %v1469 = vunpack.c.l.b16 %v1373
    %v1470 = vunpack.c.l.b16 %v1374
    %v1471 = vunpack.c.l.b16 %v1375
    %v1472 = vunpack.c.l.b16 %v1376
    %v1473 = vunpack.c.l.b16 %v1377
    %v1474 = vunpack.c.l.b16 %v1378
    %v1475 = vunpack.c.l.b16 %v1379
    %v1476 = vunpack.c.l.b16 %v1380
    %v1477 = vunpack.c.l.b16 %v1381
    %v1478 = vunpack.c.l.b16 %v1382
    %v1479 = vunpack.c.l.b16 %v1383
    %v1480 = vunpack.c.l.b16 %v1384
    %v1481 = vunpack.c.l.b16 %v1385
    %v1482 = vunpack.c.l.b16 %v1386
    %v1483 = vunpack.c.l.b16 %v1387
    %v1484 = vunpack.c.l.b16 %v1388
    %v1485 = vunpack.c.l.b16 %v1389
    %v1486 = vunpack.c.l.b16 %v1390
    %v1487 = vunpack.c.l.b16 %v1391
    %v1488 = vunpack.c.l.b16 %v1392
    %v1489 = vunpack.c.l.b16 %v1393
    %v1490 = vunpack.c.l.b16 %v1394
    %v1491 = vunpack.c.l.b16 %v1395
    %v1492 = vunpack.c.l.b16 %v1396
    %v1493 = vunpack.c.l.b16 %v1397
    %v1494 = vunpack.c.l.b16 %v1398
    %v1495 = vunpack.c.l.b16 %v1399
    %v1496 = vunpack.c.l.b16 %v1400
    %v1497 = vunpack.c.l.b16 %v1401
    %v1498 = vunpack.c.l.b16 %v1402
    %v1499 = vunpack.c.l.b16 %v1403
    %v1500 = vpack.c.b16 %v1453, %v1452
    %v1501 = vpack.c.b16 %v1455, %v1454
    %v1502 = vpack.c.b16 %v1457, %v1456
    %v1503 = vpack.c.b16 %v1459, %v1458
    %v1504 = vpack.c.b16 %v1461, %v1460
    %v1505 = vpack.c.b16 %v1463, %v1462
    %v1506 = vpack.c.b16 %v1465, %v1464
    %v1507 = vpack.c.b16 %v1467, %v1466
    %v1508 = vpack.c.b16 %v1469, %v1468
    %v1509 = vpack.c.b16 %v1471, %v1470
    %v1510 = vpack.c.b16 %v1473, %v1472
    %v1511 = vpack.c.b16 %v1475, %v1474
    %v1512 = vpack.c.b16 %v1477, %v1476
    %v1513 = vpack.c.b16 %v1479, %v1478
    %v1514 = vpack.c.b16 %v1481, %v1480
    %v1515 = vpack.c.b16 %v1483, %v1482
    %v1516 = vpack.c.b16 %v1485, %v1484
    %v1517 = vpack.c.b16 %v1487, %v1486
    %v1518 = vpack.c.b16 %v1489, %v1488
    %v1519 = vpack.c.b16 %v1491, %v1490
    %v1520 = vpack.c.b16 %v1493, %v1492
    %v1521 = vpack.c.b16 %v1495, %v1494
    %v1522 = vpack.c.b16 %v1497, %v1496
    %v1523 = vpack.c.b16 %v1499, %v1498
    %1548 = vmatpush.bf16.msra.mxu0 %v1507
    %1549 = vmatpush.bf16.msra.mxu0 %v1506
    %1550 = vmatpush.bf16.msra.mxu0 %v1505
    %1551 = vmatpush.bf16.msra.mxu0 %v1504
    %1552 = vmatpush.bf16.msra.mxu0 %v1503
    %1553 = vmatpush.bf16.msra.mxu0 %v1502
    %1554 = vmatpush.bf16.msra.mxu0 %v1501
    %1555 = vmatpush.bf16.msra.mxu0 %v1500
    %1556 = vmatmul.bf16.gmra.mxu0 %v1353
    %v1557 = vpop.f32.mrf.mxu0
    %v1558 = vadd.f32 0.0, %v1557
    %v1559 = vpop.f32.mrf.mxu0
    %1560 = vdwg.mxu0
    %1561 = vmatpush.bf16.msra.mxu0 %v1515
    %1562 = vmatpush.bf16.msra.mxu0 %v1514
    %1563 = vmatpush.bf16.msra.mxu0 %v1513
    %1564 = vmatpush.bf16.msra.mxu0 %v1512
    %1565 = vmatpush.bf16.msra.mxu0 %v1511
    %1566 = vmatpush.bf16.msra.mxu0 %v1510
    %1567 = vmatpush.bf16.msra.mxu0 %v1509
    %1568 = vmatpush.bf16.msra.mxu0 %v1508
    %1569 = vmatmul.bf16.gmra.mxu0 %v1354
    %v1570 = vpop.f32.mrf.mxu0
    %v1571 = vadd.f32 %v1558, %v1570
    %v1572 = vpop.f32.mrf.mxu0
    %1573 = vdwg.mxu0
    %1574 = vmatpush.bf16.msra.mxu0 %v1523
    %1575 = vmatpush.bf16.msra.mxu0 %v1522
    %1576 = vmatpush.bf16.msra.mxu0 %v1521
    %1577 = vmatpush.bf16.msra.mxu0 %v1520
    %1578 = vmatpush.bf16.msra.mxu0 %v1519
    %1579 = vmatpush.bf16.msra.mxu0 %v1518
    %1580 = vmatpush.bf16.msra.mxu0 %v1517
    %1581 = vmatpush.bf16.msra.mxu0 %v1516
    %1582 = vmatmul.bf16.gmra.mxu0 %v1355
    %v1583 = vpop.f32.mrf.mxu0
    %v1584 = vadd.f32 %v1571, %v1583
    %v1585 = vpop.f32.mrf.mxu0
    %1586 = vdwg.mxu0
    %v1587 = vld [vmem:[%s4] sm:$0x1]
    %v1588 = vperm.slane %v1587, 0
    %v1589 = vmul.f32 %v1584, %v1588
    %v1590 = vld [vmem:[%s4 + $0x1] sm:$0x1]
    %v1591 = vperm.slane %v1590, 0
    %v1592 = vadd.f32 %v1589, %v1591
    %v1593 = vpack.c.bf16 %v1592, %v1592
    %v1594 = vld [vmem:[%s5] sm:$0xf]
    %v1595 = vld [vmem:[%s5 + $0x4] sm:$0xf]
    %v1596 = vld [vmem:[%s5 + $0x8] sm:$0xf]
    %v1597 = vld [vmem:[%s5 + $0xc] sm:$0xf]
    %v1598 = vld [vmem:[%s5 + $0x10] sm:$0xf]
    %v1599 = vld [vmem:[%s5 + $0x14] sm:$0xf]
    %v1600 = vld [vmem:[%s5 + $0x18] sm:$0xf]
    %v1601 = vld [vmem:[%s5 + $0x1c] sm:$0xf]
    %v1602 = vld [vmem:[%s5 + $0x20] sm:$0xf]
    %v1603 = vld [vmem:[%s5 + $0x24] sm:$0xf]
    %v1604 = vld [vmem:[%s5 + $0x28] sm:$0xf]
    %v1605 = vld [vmem:[%s5 + $0x2c] sm:$0xf]
    %v1606 = vld [vmem:[%s5 + $0x30] sm:$0xf]
    %v1607 = vld [vmem:[%s5 + $0x34] sm:$0xf]
    %v1608 = vld [vmem:[%s5 + $0x38] sm:$0xf]
    %v1609 = vld [vmem:[%s5 + $0x3c] sm:$0xf]
    %v1626 = vunpack.c.l.b16 %v1594
    %v1627 = vunpack.c.l.b16 %v1595
    %v1628 = vunpack.c.l.b16 %v1596
    %v1629 = vunpack.c.l.b16 %v1597
    %v1630 = vunpack.c.l.b16 %v1598
    %v1631 = vunpack.c.l.b16 %v1599
    %v1632 = vunpack.c.l.b16 %v1600
    %v1633 = vunpack.c.l.b16 %v1601
    %v1634 = vunpack.c.l.b16 %v1602
    %v1635 = vunpack.c.l.b16 %v1603
    %v1636 = vunpack.c.l.b16 %v1604
    %v1637 = vunpack.c.l.b16 %v1605
    %v1638 = vunpack.c.l.b16 %v1606
    %v1639 = vunpack.c.l.b16 %v1607
    %v1640 = vunpack.c.l.b16 %v1608
    %v1641 = vunpack.c.l.b16 %v1609
    %v1642 = vpack.c.b16 %v1627, %v1626
    %v1643 = vpack.c.b16 %v1629, %v1628
    %v1644 = vpack.c.b16 %v1631, %v1630
    %v1645 = vpack.c.b16 %v1633, %v1632
    %v1646 = vpack.c.b16 %v1635, %v1634
    %v1647 = vpack.c.b16 %v1637, %v1636
    %v1648 = vpack.c.b16 %v1639, %v1638
    %v1649 = vpack.c.b16 %v1641, %v1640
    %1658 = vmatpush.bf16.msra.mxu0 %v1649
    %1659 = vmatpush.bf16.msra.mxu0 %v1648
    %1660 = vmatpush.bf16.msra.mxu0 %v1647
    %1661 = vmatpush.bf16.msra.mxu0 %v1646
    %1662 = vmatpush.bf16.msra.mxu0 %v1645
    %1663 = vmatpush.bf16.msra.mxu0 %v1644
    %1664 = vmatpush.bf16.msra.mxu0 %v1643
    %1665 = vmatpush.bf16.msra.mxu0 %v1642
    %1666 = vmatmul.bf16.gmra.mxu0 %v1593
    %v1667 = vpop.f32.mrf.mxu0
    %v1668 = vadd.f32 0.0, %v1667
    %v1669 = vpop.f32.mrf.mxu0
    %1670 = vdwg.mxu0
    %v1671 = vld [vmem:[%s6] sm:$0x1]
    %v1672 = vperm.slane %v1671, 0
    %v1673 = vmul.f32 %v1668, %v1672
    %v1674 = vld [vmem:[%s6 + $0x1] sm:$0x1]
    %v1675 = vperm.slane %v1674, 0
    %v1676 = vadd.f32 %v1673, %v1675
    %1677 = vst [vmem:[%s7] sm:$0xff] %v1676
    // Predicated region
    $region38: #{_ternnet_forward_impl.1} parent=1 // pred_check
      _
    $region39: #{_ternnet_forward_impl.1} parent=1 // pred_check_branch
      %1679 = sbr.rel (0) target = $region41
    $region40: #{_ternnet_forward_impl.1} parent=1 // pred_region
      _
    $region41: #{_ternnet_forward_impl.1} parent=1 // pred_fallthru
      _
    // Predicated region
    $region42: #{_ternnet_forward_impl.1} parent=1 // pred_check
      _
    $region43: #{_ternnet_forward_impl.1} parent=1 // pred_check_branch
      %1681 = sbr.rel (0) target = $region45
    $region44: #{_ternnet_forward_impl.1} parent=1 // pred_region
      _
    $region45: #{_ternnet_forward_impl.1} parent=1 // pred_fallthru
      _
    %1682 = vsyncpa [#allocation3], 1
    %1683 = vsyncpa [#allocation5], 1

</llo_original>
